<compile_context>
chip_gen: v7x
topology: tpu7x:2x2x1
jax: 0.10.0
libtpu: 0.0.40
codegen_flags: <defaults>
</compile_context>

<pallas_src>
import functools

import jax
import jax.numpy as jnp
from jax.experimental import pallas as pl
from jax.experimental.pallas import tpu as pltpu


_D = 16 * 16 * 3  # 768 dense output features


def _dense_relu_kernel(sec_ref, w_ref, b_ref, y_ref):
    """sec_ref: (B,L)  w_ref: (L,768)  b_ref: (1,768)  y_ref: (B,768)."""
    y = jnp.dot(sec_ref[...], w_ref[...], preferred_element_type=jnp.float32)
    y_ref[...] = jnp.maximum(y + b_ref[...], 0.0)


def _upsample_kernel(y_ref, u_ref, o_ref, *, G, s, R):
    """y_ref: (1,G,16)  u_ref: (16,R)  o_ref: (1,G*s,R).

    Column replication on the MXU via the 0/1 selection matrix U (exact copy);
    row replication via broadcasted sublane stores (no (3R,R) VMEM temp).
    """
    t = jnp.dot(y_ref[0], u_ref[...], preferred_element_type=jnp.float32)  # (G,R)
    for g in range(G):                                   # static unroll, G <= 48
        o_ref[0, g * s:(g + 1) * s, :] = jnp.broadcast_to(
            t[g:g + 1, :], (s, R)).astype(o_ref.dtype)


def _choose_row_group(s, R, budget_bytes=2 * 1024 * 1024):
    """Pick G (source rows per output tile; divides 48) so the (G*s, R) f32
    output block stays under `budget_bytes` and its row count is 8-aligned
    (or the full 3R extent)."""
    for G in (48, 24, 16, 8, 4, 2, 1):
        if (G == 48 or (G * s) % 8 == 0) and G * s * R * 4 <= budget_bytes:
            return G
    return 1


def secret2image_forward(secret, weight, bias, resolution,
                         out_dtype=jnp.float32):
    """Pallas forward of Secret2Image.

    secret: (B, L); weight: (768, L) (PyTorch nn.Linear layout); bias: (768,).
    Returns (B, 3, resolution, resolution) in `out_dtype`.
    """
    assert resolution % 16 == 0, "Resolution must be a multiple of 16."
    B, L = secret.shape
    R = resolution
    s = R // 16

    sec = secret.astype(jnp.float32)
    wt = weight.astype(jnp.float32).T                 # (L, 768)
    b2 = bias.astype(jnp.float32).reshape(1, _D)

    # --- stage 1: dense + bias + ReLU for the whole batch (one MXU matmul) ---
    y = pl.pallas_call(
        _dense_relu_kernel,
        out_shape=jax.ShapeDtypeStruct((B, _D), jnp.float32),
        grid=(1,),
        in_specs=[pl.BlockSpec((B, L), lambda i: (0, 0)),
                  pl.BlockSpec((L, _D), lambda i: (0, 0)),
                  pl.BlockSpec((1, _D), lambda i: (0, 0))],
        out_specs=pl.BlockSpec((B, _D), lambda i: (0, 0)),
    )(sec, wt, b2)

    # view(-1, 3, 16, 16) flattened to 48 source rows of 16 pixels (free view).
    y3 = y.reshape(B, 48, 16)

    # Column-replication selection matrix U[k, j] = 1 iff j // s == k,
    # built once here (grid-invariant) and kept VMEM-resident in the kernel.
    k_i = jnp.arange(16, dtype=jnp.int32).reshape(16, 1)
    j_i = jnp.arange(R, dtype=jnp.int32).reshape(1, R)
    u = ((j_i >= k_i * s) & (j_i < (k_i + 1) * s)).astype(jnp.float32)

    # --- stage 2: nearest upsample, tiled over (batch, output-row blocks) ----
    G = _choose_row_group(s, R)
    out = pl.pallas_call(
        functools.partial(_upsample_kernel, G=G, s=s, R=R),
        out_shape=jax.ShapeDtypeStruct((B, 3 * R, R), out_dtype),
        grid=(B, 48 // G),
        in_specs=[pl.BlockSpec((1, G, 16), lambda b, r: (b, r, 0)),
                  pl.BlockSpec((16, R), lambda b, r: (0, 0))],     # U resident
        out_specs=pl.BlockSpec((1, G * s, R), lambda b, r: (b, r, 0)),
        compiler_params=pltpu.CompilerParams(
            dimension_semantics=("parallel", "parallel")),
    )(y3, u)

    return out.reshape(B, 3, R, R)


# ----------------------------- reference (plain JAX) ------------------------
def _ref_forward(secret, weight, bias, resolution):
    s = resolution // 16
    y = jnp.dot(secret, weight.T, precision=jax.lax.Precision.HIGHEST) + bias
    x = y.reshape(-1, 3, 16, 16)
    x = jnp.repeat(jnp.repeat(x, s, axis=2), s, axis=3)  # nearest upsample
    return jnp.maximum(x, 0.0)                           # ReLU


if __name__ == "__main__":
    B, secret_len, resolution = 2, 8, 32

    key = jax.random.PRNGKey(0)
    k1, k2, k3 = jax.random.split(key, 3)
    secret = jax.random.normal(k1, (B, secret_len), jnp.float32)
    bound = 1.0 / (secret_len ** 0.5)
    weight = jax.random.uniform(k2, (16 * 16 * 3, secret_len), jnp.float32,
                                -bound, bound)
    bias = jax.random.uniform(k3, (16 * 16 * 3,), jnp.float32, -bound, bound)

    out = jax.block_until_ready(
        secret2image_forward(secret, weight, bias, resolution))
    ref = jax.block_until_ready(_ref_forward(secret, weight, bias, resolution))

    assert out.shape == (B, 3, resolution, resolution), out.shape
    err = float(jnp.max(jnp.abs(out - ref)))
    assert jnp.allclose(out, ref, atol=1e-4, rtol=1e-4), f"max abs err {err}"
    print("KERNEL_OK")
</pallas_src>

<mosaic_0001>
module attributes {stable_mosaic.version = 11 : i64} {
  func.func @_dense_relu_kernel(%arg0: i32, %arg1: memref<2x8xf32, #tpu.memory_space<vmem>>, %arg2: memref<8x768xf32, #tpu.memory_space<vmem>>, %arg3: memref<1x768xf32, #tpu.memory_space<vmem>>, %arg4: memref<2x768xf32, #tpu.memory_space<vmem>>) attributes {dimension_semantics = [#tpu.dimension_semantics<arbitrary>], iteration_bounds = array<i64: 1>, scalar_prefetch = 0 : i64, scratch_operands = 0 : i64, tpu.core_type = #tpu.core_type<tc>, window_params = [{pipeline_mode = #tpu.pipeline_mode<synchronous>, transform_indices = @transform_0, window_bounds = array<i64: 2, 8>}, {pipeline_mode = #tpu.pipeline_mode<synchronous>, transform_indices = @transform_1, window_bounds = array<i64: 8, 768>}, {pipeline_mode = #tpu.pipeline_mode<synchronous>, transform_indices = @transform_2, window_bounds = array<i64: 1, 768>}, {pipeline_mode = #tpu.pipeline_mode<synchronous>, transform_indices = @transform_3, window_bounds = array<i64: 2, 768>}]} {
    %c0 = arith.constant 0 : index
    %c0_0 = arith.constant 0 : index
    %0 = vector.load %arg1[%c0, %c0_0] : memref<2x8xf32, #tpu.memory_space<vmem>>, vector<2x8xf32>
    %c0_1 = arith.constant 0 : index
    %c0_2 = arith.constant 0 : index
    %1 = vector.load %arg2[%c0_1, %c0_2] : memref<8x768xf32, #tpu.memory_space<vmem>>, vector<8x768xf32>
    %cst = arith.constant dense<0.000000e+00> : vector<2x768xf32>
    %2 = tpu.matmul %0, %1, %cst {dimension_numbers = #tpu.dot_dimension_numbers<[1], [0], [0], [1], [0, 0, 1, 1], [], []>} : vector<2x8xf32>, vector<8x768xf32>, vector<2x768xf32> -> vector<2x768xf32>
    %c0_3 = arith.constant 0 : index
    %c0_4 = arith.constant 0 : index
    %3 = vector.load %arg3[%c0_3, %c0_4] : memref<1x768xf32, #tpu.memory_space<vmem>>, vector<1x768xf32>
    %4 = vector.broadcast %3 : vector<1x768xf32> to vector<2x768xf32>
    %5 = arith.addf %2, %4 : vector<2x768xf32>
    %cst_5 = arith.constant 0.000000e+00 : f32
    %6 = vector.broadcast %cst_5 : f32 to vector<2x768xf32>
    %7 = arith.maximumf %5, %6 : vector<2x768xf32>
    %c0_6 = arith.constant 0 : index
    %c0_7 = arith.constant 0 : index
    %8 = vector.load %arg4[%c0_6, %c0_7] : memref<2x768xf32, #tpu.memory_space<vmem>>, vector<2x768xf32>
    tpu.vector_store %arg4[%c0_6, %c0_7], %7 {strides = array<i32>} : memref<2x768xf32, #tpu.memory_space<vmem>>, vector<2x768xf32>,
    return
  }
  func.func @transform_0(%arg0: i32) -> (i32, i32) {
    %c0_i32 = arith.constant 0 : i32
    %c0_i32_0 = arith.constant 0 : i32
    %c0_i32_1 = arith.constant 0 : i32
    return %c0_i32, %c0_i32_0 : i32, i32
  }
  func.func @transform_1(%arg0: i32) -> (i32, i32) {
    %c0_i32 = arith.constant 0 : i32
    %c0_i32_0 = arith.constant 0 : i32
    %c0_i32_1 = arith.constant 0 : i32
    return %c0_i32, %c0_i32_0 : i32, i32
  }
  func.func @transform_2(%arg0: i32) -> (i32, i32) {
    %c0_i32 = arith.constant 0 : i32
    %c0_i32_0 = arith.constant 0 : i32
    %c0_i32_1 = arith.constant 0 : i32
    return %c0_i32, %c0_i32_0 : i32, i32
  }
  func.func @transform_3(%arg0: i32) -> (i32, i32) {
    %c0_i32 = arith.constant 0 : i32
    %c0_i32_0 = arith.constant 0 : i32
    %c0_i32_1 = arith.constant 0 : i32
    return %c0_i32, %c0_i32_0 : i32, i32
  }
}

</mosaic_0001>

<llo_original>
// kernel: tpu_custom_call.1
$region0: #{tpu_custom_call.1}
  #allocation0 [shape = 'u32[]', space=smem, size = 0x4, offset = 0x4, fixed_abs, tag = 'smem constant byte address 0x4 - core index']
  #allocation1 [shape = 'u32[144,128]{1,0:T(1,128)}', space=vmem, size = 0x12000, scoped, tag = 'internal scratch']
  %s0 = inlined_call_operand.hbm [shape: f32[2,8], index: 0, kind: input, shape index: {}]
  %s1 = inlined_call_operand.hbm [shape: f32[8,768], index: 1, kind: input, shape index: {}]
  %s2 = inlined_call_operand.vmem [shape: f32[1,768], index: 2, kind: input, shape index: {}]
  %s3 = inlined_call_operand.hbm [shape: f32[2,768], index: 3, kind: output, shape index: {}]
  %s4 = sld [smem:[#allocation0]]
  $region30: #{tpu_custom_call.1} parent=0
    _
  %s6 = ssub.s32 1, %s4
  %s7 = scalar_select 0, %s6, %s4
  $region1: #{tpu_custom_call.1} parent=0
    #allocation2 [shape = 'u8[1024]{0}', space=vmem, size = 0x400, scoped, tag = 'input window, operand 0, single buffered']
    #allocation3 [shape = 's32[1]{0}', space=sflag, size = 0x4, scoped, tag = 'scoped memory for tpu_custom_call.1']
    #allocation4 [shape = 's32[1]{0}', space=sflag, size = 0x4, scoped, tag = 'scoped memory for tpu_custom_call.1']
    #allocation5 [shape = 'u8[24576]{0}', space=vmem, size = 0x6000, scoped, tag = 'input window, operand 1, single buffered']
    #allocation6 [shape = 's32[1]{0}', space=sflag, size = 0x4, scoped, tag = 'scoped memory for tpu_custom_call.1']
    #allocation7 [shape = 'u8[6144]{0}', space=vmem, size = 0x1800, scoped, tag = 'output window, operand 0, single buffered']
    %8 = vsyncpa [#allocation3], 0
    %9 = vsyncpa [#allocation6], 0
    %10 = vsyncpa [#allocation4], 0
    // Predicated region
    $region2: #{tpu_custom_call.1} parent=1 // pred_check
      _
    $region3: #{tpu_custom_call.1} parent=1 // pred_check_branch
      %12 = sbr.rel (0) target = $region5
    $region4: #{tpu_custom_call.1} parent=1 // pred_region
      %s14 = ssub.s32 32, 32
      %15 = vsyncadd [#allocation3], %s14
      %s17 = sshll.u32 [#allocation2], 4
      %s18 = int_to_ptr.vmem [resolvable:$true] %s17
      %20 = dma.hbm_to_vmem [thread:$0]  %s0, 32, %s18, [#allocation3]
    $region5: #{tpu_custom_call.1} parent=1 // pred_fallthru
      _
    // Predicated region
    $region6: #{tpu_custom_call.1} parent=1 // pred_check
      _
    $region7: #{tpu_custom_call.1} parent=1 // pred_check_branch
      %22 = sbr.rel (0) target = $region9
    $region8: #{tpu_custom_call.1} parent=1 // pred_region
      %s24 = ssub.s32 768, 768
      %25 = vsyncadd [#allocation6], %s24
      %s27 = sshll.u32 [#allocation5], 4
      %s28 = int_to_ptr.vmem [resolvable:$true] %s27
      %30 = dma.hbm_to_vmem [thread:$0]  %s1, 768, %s28, [#allocation6]
    $region9: #{tpu_custom_call.1} parent=1 // pred_fallthru
      _
    // Predicated region
    $region10: #{tpu_custom_call.1} parent=1 // pred_check
      _
    $region11: #{tpu_custom_call.1} parent=1 // pred_check_branch
      %32 = sbr.rel (0) target = $region13
    $region12: #{tpu_custom_call.1} parent=1 // pred_region
      _
    $region13: #{tpu_custom_call.1} parent=1 // pred_fallthru
      _
    // Predicated region
    $region14: #{tpu_custom_call.1} parent=1 // pred_check
      _
    $region15: #{tpu_custom_call.1} parent=1 // pred_check_branch
      %34 = sbr.rel (0) target = $region17
    $region16: #{tpu_custom_call.1} parent=1 // pred_region
      %35 = dma.done [#allocation3], 32
    $region17: #{tpu_custom_call.1} parent=1 // pred_fallthru
      _
    // Predicated region
    $region18: #{tpu_custom_call.1} parent=1 // pred_check
      _
    $region19: #{tpu_custom_call.1} parent=1 // pred_check_branch
      %37 = sbr.rel (0) target = $region21
    $region20: #{tpu_custom_call.1} parent=1 // pred_region
      %38 = dma.done [#allocation6], 768
    $region21: #{tpu_custom_call.1} parent=1 // pred_fallthru
      _
    %v39 = vld [vmem:[#allocation2] sm:$0x3]
    %v40 = vld [vmem:[#allocation5] sm:$0xff]
    %v41 = vld [vmem:[#allocation5 + $0x8] sm:$0xff]
    %v42 = vld [vmem:[#allocation5 + $0x10] sm:$0xff]
    %v43 = vld [vmem:[#allocation5 + $0x18] sm:$0xff]
    %v44 = vld [vmem:[#allocation5 + $0x20] sm:$0xff]
    %v45 = vld [vmem:[#allocation5 + $0x28] sm:$0xff]
    %v46 = vld [vmem:[%s2] sm:$0x3f]
    %v48 = vlaneseq
    %v49 = vshrl.u32 %v48, 7
    %v50 = vsub.s32 0, %v49
    %v51 = vrot.slane %v46, %v50
    %v52 = vlaneseq
    %v53 = vshrl.u32 %v52, 7
    %v54 = vsub.s32 1, %v53
    %v55 = vrot.slane %v46, %v54
    %v56 = vlaneseq
    %v57 = vshrl.u32 %v56, 7
    %v58 = vsub.s32 2, %v57
    %v59 = vrot.slane %v46, %v58
    %v60 = vlaneseq
    %v61 = vshrl.u32 %v60, 7
    %v62 = vsub.s32 3, %v61
    %v63 = vrot.slane %v46, %v62
    %v64 = vlaneseq
    %v65 = vshrl.u32 %v64, 7
    %v66 = vsub.s32 4, %v65
    %v67 = vrot.slane %v46, %v66
    %v68 = vlaneseq
    %v69 = vshrl.u32 %v68, 7
    %v70 = vsub.s32 5, %v69
    %v71 = vrot.slane %v46, %v70
    %vm78 = vcmask 64512
    %v80 = vsel %vm78, %v39, 0
    %82 = vmatprep.subr.mxu0 %v41
    %83 = vmatpush1.msra.mxu0 %v40
    %84 = vmatprep.subr.mxu0 0.0
    %85 = vmatpush1.msra.mxu0 0.0
    %86 = vmatprep.subr.mxu0 0.0
    %87 = vmatpush1.msra.mxu0 0.0
    %88 = vmatprep.subr.mxu0 0.0
    %89 = vmatpush1.msra.mxu0 0.0
    %90 = vmatprep.subr.mxu0 0.0
    %91 = vmatpush1.msra.mxu0 0.0
    %92 = vmatprep.subr.mxu0 0.0
    %93 = vmatpush1.msra.mxu0 0.0
    %94 = vmatprep.subr.mxu0 0.0
    %95 = vmatpush1.msra.mxu0 0.0
    %96 = vmatprep.subr.mxu0 0.0
    %97 = vmatpush1.msra.mxu0 0.0
    %98 = vmatprep.subr.mxu0 0.0
    %99 = vmatpush1.msra.mxu0 0.0
    %100 = vmatprep.subr.mxu0 0.0
    %101 = vmatpush1.msra.mxu0 0.0
    %102 = vmatprep.subr.mxu0 0.0
    %103 = vmatpush1.msra.mxu0 0.0
    %104 = vmatprep.subr.mxu0 0.0
    %105 = vmatpush1.msra.mxu0 0.0
    %106 = vmatprep.subr.mxu0 0.0
    %107 = vmatpush1.msra.mxu0 0.0
    %108 = vmatprep.subr.mxu0 0.0
    %109 = vmatpush1.msra.mxu0 0.0
    %110 = vmatprep.subr.mxu0 0.0
    %111 = vmatpush1.msra.mxu0 0.0
    %112 = vmatprep.subr.mxu0 0.0
    %113 = vmatpush1.msra.mxu0 0.0
    %114 = vmatprep.subr.mxu0 0.0
    %115 = vmatpush1.msra.mxu0 0.0
    %116 = vmatprep.subr.mxu0 0.0
    %117 = vmatpush1.msra.mxu0 0.0
    %118 = vmatprep.subr.mxu0 0.0
    %119 = vmatpush1.msra.mxu0 0.0
    %120 = vmatprep.subr.mxu0 0.0
    %121 = vmatpush1.msra.mxu0 0.0
    %122 = vmatprep.subr.mxu0 0.0
    %123 = vmatpush1.msra.mxu0 0.0
    %124 = vmatprep.subr.mxu0 0.0
    %125 = vmatpush1.msra.mxu0 0.0
    %126 = vmatprep.subr.mxu0 0.0
    %127 = vmatpush1.msra.mxu0 0.0
    %128 = vmatprep.subr.mxu0 0.0
    %129 = vmatpush1.msra.mxu0 0.0
    %130 = vmatprep.subr.mxu0 0.0
    %131 = vmatpush1.msra.mxu0 0.0
    %132 = vmatprep.subr.mxu0 0.0
    %133 = vmatpush1.msra.mxu0 0.0
    %134 = vmatprep.subr.mxu0 0.0
    %135 = vmatpush1.msra.mxu0 0.0
    %136 = vmatprep.subr.mxu0 0.0
    %137 = vmatpush1.msra.mxu0 0.0
    %138 = vmatprep.subr.mxu0 0.0
    %139 = vmatpush1.msra.mxu0 0.0
    %140 = vmatprep.subr.mxu0 0.0
    %141 = vmatpush1.msra.mxu0 0.0
    %142 = vmatprep.subr.mxu0 0.0
    %143 = vmatpush1.msra.mxu0 0.0
    %144 = vmatprep.subr.mxu0 0.0
    %145 = vmatpush1.msra.mxu0 0.0
    %146 = vmatprep.mubr.f32.mxu0 0.0
    %147 = vmatmul.mubr.f32.gmra.mrb[0].mxu0 %v80
    %v148 = vpop.f32.mrb[0].mxu0
    %v149 = vadd.f32 %v51, %v148
    %v150 = vpop.f32.mrb[0].mxu0
    %v151 = vadd.f32 %v55, %v150
    %152 = vdwg.mxu0
    %153 = vmatprep.subr.mxu0 %v43
    %154 = vmatpush1.msra.mxu0 %v42
    %155 = vmatprep.subr.mxu0 0.0
    %156 = vmatpush1.msra.mxu0 0.0
    %157 = vmatprep.subr.mxu0 0.0
    %158 = vmatpush1.msra.mxu0 0.0
    %159 = vmatprep.subr.mxu0 0.0
    %160 = vmatpush1.msra.mxu0 0.0
    %161 = vmatprep.subr.mxu0 0.0
    %162 = vmatpush1.msra.mxu0 0.0
    %163 = vmatprep.subr.mxu0 0.0
    %164 = vmatpush1.msra.mxu0 0.0
    %165 = vmatprep.subr.mxu0 0.0
    %166 = vmatpush1.msra.mxu0 0.0
    %167 = vmatprep.subr.mxu0 0.0
    %168 = vmatpush1.msra.mxu0 0.0
    %169 = vmatprep.subr.mxu0 0.0
    %170 = vmatpush1.msra.mxu0 0.0
    %171 = vmatprep.subr.mxu0 0.0
    %172 = vmatpush1.msra.mxu0 0.0
    %173 = vmatprep.subr.mxu0 0.0
    %174 = vmatpush1.msra.mxu0 0.0
    %175 = vmatprep.subr.mxu0 0.0
    %176 = vmatpush1.msra.mxu0 0.0
    %177 = vmatprep.subr.mxu0 0.0
    %178 = vmatpush1.msra.mxu0 0.0
    %179 = vmatprep.subr.mxu0 0.0
    %180 = vmatpush1.msra.mxu0 0.0
    %181 = vmatprep.subr.mxu0 0.0
    %182 = vmatpush1.msra.mxu0 0.0
    %183 = vmatprep.subr.mxu0 0.0
    %184 = vmatpush1.msra.mxu0 0.0
    %185 = vmatprep.subr.mxu0 0.0
    %186 = vmatpush1.msra.mxu0 0.0
    %187 = vmatprep.subr.mxu0 0.0
    %188 = vmatpush1.msra.mxu0 0.0
    %189 = vmatprep.subr.mxu0 0.0
    %190 = vmatpush1.msra.mxu0 0.0
    %191 = vmatprep.subr.mxu0 0.0
    %192 = vmatpush1.msra.mxu0 0.0
    %193 = vmatprep.subr.mxu0 0.0
    %194 = vmatpush1.msra.mxu0 0.0
    %195 = vmatprep.subr.mxu0 0.0
    %196 = vmatpush1.msra.mxu0 0.0
    %197 = vmatprep.subr.mxu0 0.0
    %198 = vmatpush1.msra.mxu0 0.0
    %199 = vmatprep.subr.mxu0 0.0
    %200 = vmatpush1.msra.mxu0 0.0
    %201 = vmatprep.subr.mxu0 0.0
    %202 = vmatpush1.msra.mxu0 0.0
    %203 = vmatprep.subr.mxu0 0.0
    %204 = vmatpush1.msra.mxu0 0.0
    %205 = vmatprep.subr.mxu0 0.0
    %206 = vmatpush1.msra.mxu0 0.0
    %207 = vmatprep.subr.mxu0 0.0
    %208 = vmatpush1.msra.mxu0 0.0
    %209 = vmatprep.subr.mxu0 0.0
    %210 = vmatpush1.msra.mxu0 0.0
    %211 = vmatprep.subr.mxu0 0.0
    %212 = vmatpush1.msra.mxu0 0.0
    %213 = vmatprep.subr.mxu0 0.0
    %214 = vmatpush1.msra.mxu0 0.0
    %215 = vmatprep.subr.mxu0 0.0
    %216 = vmatpush1.msra.mxu0 0.0
    %217 = vmatprep.mubr.f32.mxu0 0.0
    %218 = vmatmul.mubr.f32.gmra.mrb[0].mxu0 %v80
    %v219 = vpop.f32.mrb[0].mxu0
    %v220 = vadd.f32 %v59, %v219
    %v221 = vpop.f32.mrb[0].mxu0
    %v222 = vadd.f32 %v63, %v221
    %223 = vdwg.mxu0
    %224 = vmatprep.subr.mxu0 %v45
    %225 = vmatpush1.msra.mxu0 %v44
    %226 = vmatprep.subr.mxu0 0.0
    %227 = vmatpush1.msra.mxu0 0.0
    %228 = vmatprep.subr.mxu0 0.0
    %229 = vmatpush1.msra.mxu0 0.0
    %230 = vmatprep.subr.mxu0 0.0
    %231 = vmatpush1.msra.mxu0 0.0
    %232 = vmatprep.subr.mxu0 0.0
    %233 = vmatpush1.msra.mxu0 0.0
    %234 = vmatprep.subr.mxu0 0.0
    %235 = vmatpush1.msra.mxu0 0.0
    %236 = vmatprep.subr.mxu0 0.0
    %237 = vmatpush1.msra.mxu0 0.0
    %238 = vmatprep.subr.mxu0 0.0
    %239 = vmatpush1.msra.mxu0 0.0
    %240 = vmatprep.subr.mxu0 0.0
    %241 = vmatpush1.msra.mxu0 0.0
    %242 = vmatprep.subr.mxu0 0.0
    %243 = vmatpush1.msra.mxu0 0.0
    %244 = vmatprep.subr.mxu0 0.0
    %245 = vmatpush1.msra.mxu0 0.0
    %246 = vmatprep.subr.mxu0 0.0
    %247 = vmatpush1.msra.mxu0 0.0
    %248 = vmatprep.subr.mxu0 0.0
    %249 = vmatpush1.msra.mxu0 0.0
    %250 = vmatprep.subr.mxu0 0.0
    %251 = vmatpush1.msra.mxu0 0.0
    %252 = vmatprep.subr.mxu0 0.0
    %253 = vmatpush1.msra.mxu0 0.0
    %254 = vmatprep.subr.mxu0 0.0
    %255 = vmatpush1.msra.mxu0 0.0
    %256 = vmatprep.subr.mxu0 0.0
    %257 = vmatpush1.msra.mxu0 0.0
    %258 = vmatprep.subr.mxu0 0.0
    %259 = vmatpush1.msra.mxu0 0.0
    %260 = vmatprep.subr.mxu0 0.0
    %261 = vmatpush1.msra.mxu0 0.0
    %262 = vmatprep.subr.mxu0 0.0
    %263 = vmatpush1.msra.mxu0 0.0
    %264 = vmatprep.subr.mxu0 0.0
    %265 = vmatpush1.msra.mxu0 0.0
    %266 = vmatprep.subr.mxu0 0.0
    %267 = vmatpush1.msra.mxu0 0.0
    %268 = vmatprep.subr.mxu0 0.0
    %269 = vmatpush1.msra.mxu0 0.0
    %270 = vmatprep.subr.mxu0 0.0
    %271 = vmatpush1.msra.mxu0 0.0
    %272 = vmatprep.subr.mxu0 0.0
    %273 = vmatpush1.msra.mxu0 0.0
    %274 = vmatprep.subr.mxu0 0.0
    %275 = vmatpush1.msra.mxu0 0.0
    %276 = vmatprep.subr.mxu0 0.0
    %277 = vmatpush1.msra.mxu0 0.0
    %278 = vmatprep.subr.mxu0 0.0
    %279 = vmatpush1.msra.mxu0 0.0
    %280 = vmatprep.subr.mxu0 0.0
    %281 = vmatpush1.msra.mxu0 0.0
    %282 = vmatprep.subr.mxu0 0.0
    %283 = vmatpush1.msra.mxu0 0.0
    %284 = vmatprep.subr.mxu0 0.0
    %285 = vmatpush1.msra.mxu0 0.0
    %286 = vmatprep.subr.mxu0 0.0
    %287 = vmatpush1.msra.mxu0 0.0
    %288 = vmatprep.mubr.f32.mxu0 0.0
    %289 = vmatmul.mubr.f32.gmra.mrb[0].mxu0 %v80
    %v290 = vpop.f32.mrb[0].mxu0
    %v291 = vadd.f32 %v67, %v290
    %v292 = vpop.f32.mrb[0].mxu0
    %v293 = vadd.f32 %v71, %v292
    %294 = vdwg.mxu0
    %v295 = vmax.f32 %v149, 0.0
    %v296 = vmax.f32 %v151, 0.0
    %v297 = vmax.f32 %v220, 0.0
    %v298 = vmax.f32 %v222, 0.0
    %v299 = vmax.f32 %v291, 0.0
    %v300 = vmax.f32 %v293, 0.0
    %v307 = vcombine.low %v295, %v296
    %v308 = vcombine.low %v297, %v298
    %v310 = vunpack.c.l.s4 1983009808
    %v311 = vunpack.c.0.s8 %v310
    %v312 = vlaneseq
    %v313 = vshrl.u32 %v312, 7
    %v314 = vsub.s32 %v311, %v313
    %v315 = vrot.slane %v307, %v314
    %v317 = vunpack.c.l.s4 1983009808
    %v318 = vunpack.c.0.s8 %v317
    %v319 = vlaneseq
    %v320 = vshrl.u32 %v319, 7
    %v321 = vsub.s32 %v318, %v320
    %v322 = vrot.slane %v308, %v321
    %v323 = vcombine.low %v315, %v322
    %v324 = vcombine.low %v299, %v300
    %v326 = vunpack.c.l.s4 1983009808
    %v327 = vunpack.c.0.s8 %v326
    %v328 = vlaneseq
    %v329 = vshrl.u32 %v328, 7
    %v330 = vsub.s32 %v327, %v329
    %v331 = vrot.slane %v324, %v330
    %334 = vst [vmem:[#allocation7] sm:$0xff] %v323
    %335 = vst [vmem:[#allocation7 + $0x8] sm:$0xf] %v331
    // Predicated region
    $region22: #{tpu_custom_call.1} parent=1 // pred_check
      _
    $region23: #{tpu_custom_call.1} parent=1 // pred_check_branch
      %337 = sbr.rel (0) target = $region25
    $region24: #{tpu_custom_call.1} parent=1 // pred_region
      %s339 = ssub.s32 192, 192
      %340 = vsyncadd [#allocation4], %s339
      %s342 = sshll.u32 [#allocation7], 4
      %s343 = int_to_ptr.vmem [resolvable:$true] %s342
      %345 = dma.vmem_to_hbm [thread:$0]  %s343, 192, %s3, [#allocation4]
    $region25: #{tpu_custom_call.1} parent=1 // pred_fallthru
      _
    // Predicated region
    $region26: #{tpu_custom_call.1} parent=1 // pred_check
      _
    $region27: #{tpu_custom_call.1} parent=1 // pred_check_branch
      %347 = sbr.rel (0) target = $region29
    $region28: #{tpu_custom_call.1} parent=1 // pred_region
      %348 = dma.done [#allocation4], 192
    $region29: #{tpu_custom_call.1} parent=1 // pred_fallthru
      _
    %349 = vsyncpa [#allocation3], 1
    %350 = vsyncpa [#allocation6], 1
    %351 = vsyncpa [#allocation4], 1

</llo_original>
